<compile_context>
chip_gen: v5e
topology: v5e:2x2
jax: 0.10.0
libtpu: 0.0.40
codegen_flags: <defaults>
</compile_context>

<pallas_src>
import functools

import numpy as np
import jax
import jax.numpy as jnp
from jax import lax
from jax.experimental import pallas as pl
from jax.experimental.pallas import tpu as pltpu

EPS = 1e-12  # F.normalize default eps


def _round_up(n, m):
    return ((n + m - 1) // m) * m


# --------------------------------------------------------------------------- #
# Kernel 1: column-wise L2 normalization of w (run once, tiled over classes).
# Emits bf16 so the resident copy in kernel 2 is half the size and feeds the
# MXU's native bf16 path.
# --------------------------------------------------------------------------- #
def _normalize_w_kernel(w_ref, wn_ref):
    w = w_ref[...].astype(jnp.float32)                       # (Fp, 128)
    sumsq = jnp.sum(w * w, axis=0, keepdims=True)            # column sum of squares
    # x / max(||x||, eps)  ==  x * rsqrt(max(sumsq, eps^2))   (one EUP op)
    wn_ref[...] = (w * lax.rsqrt(jnp.maximum(sumsq, EPS * EPS))).astype(wn_ref.dtype)


# --------------------------------------------------------------------------- #
# Kernel 2: fused row-normalize(x) @ w_n + arc-margin softmax epilogue.
# --------------------------------------------------------------------------- #
def _arcsoftmax_kernel(x_ref, wn_ref, out_ref, *, s, m, pad_cols):
    x = x_ref[...].astype(jnp.float32)                       # (TB, Fp)

    # Row-wise L2 normalize x with rsqrt (avoids sqrt + divide).
    sumsq = jnp.sum(x * x, axis=1, keepdims=True)
    x_n = x * lax.rsqrt(jnp.maximum(sumsq, EPS * EPS))

    # logits = x_n @ w_n on the MXU (bf16 inputs, f32 accumulate).
    # cosa == logits / 10.
    logits = jnp.dot(x_n.astype(jnp.bfloat16), wn_ref[...],
                     preferred_element_type=jnp.float32)

    # cos(acos(cosa) + m) = cosa*cos(m) - sin_a*sin(m),  sin_a = sqrt(1-cosa^2).
    # |cosa| <= ~0.1, so a 3-term series replaces the EUP sqrt (err < 1e-7).
    cosa = logits * jnp.float32(0.1)
    c2 = cosa * cosa
    sin_a = 1.0 - 0.5 * c2 - 0.125 * c2 * c2

    # Fold the /10 and *10:
    #   e_a  = exp(s * cosa * 10)     = exp(s * logits)
    #   e_am = exp(s * cos(a+m) * 10) = exp(s*cos_m*logits - 10*s*sin_m*sin_a)
    s_f = jnp.float32(s)
    s_cos_m = jnp.float32(s * np.cos(m))
    ten_s_sin_m = jnp.float32(10.0 * s * np.sin(m))
    e_a = jnp.exp(s_f * logits)
    e_am = jnp.exp(s_cos_m * logits - ten_s_sin_m * sin_a)

    # Padded w columns are exactly 0 -> logits 0 -> e_a = 1 there, so correct
    # the row sum with one scalar instead of masking every element.
    row_sum = jnp.sum(e_a, axis=1, keepdims=True)
    if pad_cols:
        row_sum = row_sum - jnp.float32(pad_cols)

    denom = row_sum - e_a + e_am
    out_ref[...] = (e_am * pl.reciprocal(denom, approx=True)).astype(out_ref.dtype)


# --------------------------------------------------------------------------- #
# Wrapper
# --------------------------------------------------------------------------- #
def arcsoftmax(x, w, s=1.0, m=0.2):
    """x: (B, feature_num) float32; w: (feature_num, cls_num) float32."""
    B, F = x.shape
    F2, C = w.shape
    assert F == F2

    # Lane-dense feature and class dims.
    Fp = _round_up(max(F, 1), 128)
    Cp = _round_up(max(C, 1), 128)

    # ---- batch tile selection ------------------------------------------------
    TB = min(256, _round_up(B, 8))
    # Prefer >= 2 grid steps so x/out DMA pipelines and both v7x TCs get work.
    if B > 8 and _round_up(B, TB) // TB < 2:
        TB = max(8, _round_up((B + 1) // 2, 8))

    # Generation-aware VMEM budget (v7x has only 64 MiB physical).
    try:
        vmem_cap = int(pltpu.get_tpu_info().vmem_capacity_bytes)
    except Exception:
        vmem_cap = 64 << 20  # conservative fallback
    vmem_budget = int(0.8 * vmem_cap)

    def _vmem_est(tb):
        # double-buffered x tile (f32) + single-buffered resident wn (bf16)
        # + double-buffered out tile (f32) + headroom for Mosaic scratch.
        return 2 * tb * Fp * 4 + Fp * Cp * 2 + 2 * tb * Cp * 4 + (2 << 20)

    while TB > 8 and _vmem_est(TB) > vmem_budget:
        TB = max(8, _round_up(TB // 2, 8))

    Bp = _round_up(B, TB)

    # ---- pad inputs (zero padding changes no norm / dot product) -------------
    x_pad = x.astype(jnp.float32)
    if (Bp, Fp) != (B, F):
        x_pad = jnp.pad(x_pad, ((0, Bp - B), (0, Fp - F)))
    w_pad = w.astype(jnp.float32)
    if (Fp, Cp) != (F, C):
        w_pad = jnp.pad(w_pad, ((0, Fp - F), (0, Cp - C)))

    # ---- kernel 1: normalize w once (instead of once per batch tile) ---------
    wn = pl.pallas_call(
        _normalize_w_kernel,
        out_shape=jax.ShapeDtypeStruct((Fp, Cp), jnp.bfloat16),
        grid_spec=pltpu.PrefetchScalarGridSpec(
            num_scalar_prefetch=0,
            grid=(Cp // 128,),
            in_specs=[pl.BlockSpec((Fp, 128), lambda j: (0, j))],
            out_specs=pl.BlockSpec((Fp, 128), lambda j: (0, j)),
        ),
        compiler_params=pltpu.CompilerParams(
            dimension_semantics=("parallel",)),
    )(w_pad)

    # ---- kernel 2: fused normalize(x) @ w_n + arc-margin softmax -------------
    kernel = functools.partial(_arcsoftmax_kernel,
                               s=float(s), m=float(m), pad_cols=Cp - C)

    vmem_limit = int(min(max(_vmem_est(TB), 32 << 20), vmem_budget))

    out = pl.pallas_call(
        kernel,
        out_shape=jax.ShapeDtypeStruct((Bp, Cp), jnp.float32),
        grid_spec=pltpu.PrefetchScalarGridSpec(
            num_scalar_prefetch=0,
            grid=(Bp // TB,),
            in_specs=[
                # x tile, streamed / double-buffered.
                pl.BlockSpec((TB, Fp), lambda i: (i, 0)),
                # normalized w: constant index -> keep a single resident buffer.
                pl.BlockSpec((Fp, Cp), lambda i: (0, 0),
                             pipeline_mode=pl.Buffered(1)),
            ],
            out_specs=pl.BlockSpec((TB, Cp), lambda i: (i, 0)),
        ),
        compiler_params=pltpu.CompilerParams(
            dimension_semantics=("parallel",),
            vmem_limit_bytes=vmem_limit),
        cost_estimate=pl.CostEstimate(
            flops=2 * Bp * Fp * Cp,
            transcendentals=3 * Bp * Cp + Bp,   # 2 exps + reciprocal, + row rsqrt
            bytes_accessed=Bp * Fp * 4 + Fp * Cp * 2 + Bp * Cp * 4),
    )(x_pad, wn)

    return out[:B, :C]


def arcsoftmax_ref(x, w, s=1.0, m=0.2):
    # Pure-JAX reference (mirrors the PyTorch math, using acos directly).
    x_n = x / jnp.maximum(jnp.linalg.norm(x, axis=1, keepdims=True), EPS)
    w_n = w / jnp.maximum(jnp.linalg.norm(w, axis=0, keepdims=True), EPS)
    cosa = (x_n @ w_n) / 10.0
    a = jnp.arccos(cosa)
    e_am = jnp.exp(s * jnp.cos(a + m) * 10.0)
    e_a = jnp.exp(s * cosa * 10.0)
    return e_am / (jnp.sum(e_a, axis=1, keepdims=True) - e_a + e_am)


if __name__ == "__main__":
    key = jax.random.PRNGKey(0)

    # Tolerance note: bf16 MXU inputs (f32 accumulate) + the approximate EUP
    # reciprocal introduce ~1e-3-level errors in the output probabilities.
    TOL = dict(rtol=1e-2, atol=5e-3)

    # Case 1: module-sized small shapes; C not a multiple of 128 exercises the
    # scalar padded-column correction.
    kx, kw = jax.random.split(key)
    batch, feature_num, cls_num = 8, 32, 16
    x = jax.random.normal(kx, (batch, feature_num), dtype=jnp.float32)
    w = jax.random.normal(kw, (feature_num, cls_num), dtype=jnp.float32)
    out = jax.block_until_ready(arcsoftmax(x, w, s=1.0, m=0.2))
    ref = arcsoftmax_ref(x, w, s=1.0, m=0.2)
    np.testing.assert_allclose(np.asarray(out), np.asarray(ref), **TOL)

    # Case 2: C a multiple of 128 (no padded classes) and a multi-step batch grid.
    kx2, kw2 = jax.random.split(kw)
    x2 = jax.random.normal(kx2, (24, 64), dtype=jnp.float32)
    w2 = jax.random.normal(kw2, (64, 128), dtype=jnp.float32)
    out2 = jax.block_until_ready(arcsoftmax(x2, w2, s=1.0, m=0.2))
    ref2 = arcsoftmax_ref(x2, w2, s=1.0, m=0.2)
    np.testing.assert_allclose(np.asarray(out2), np.asarray(ref2), **TOL)

    print("KERNEL_OK")
</pallas_src>

<mosaic_0001>
module attributes {stable_mosaic.version = 11 : i64} {
  func.func @_normalize_w_kernel(%arg0: i32, %arg1: memref<128x128xf32, #tpu.memory_space<vmem>>, %arg2: memref<128x128xbf16, #tpu.memory_space<vmem>>) attributes {dimension_semantics = [#tpu.dimension_semantics<parallel>], iteration_bounds = array<i64: 1>, scalar_prefetch = 0 : i64, scratch_operands = 0 : i64, tpu.core_type = #tpu.core_type<tc>, window_params = [{transform_indices = @transform_0, window_bounds = array<i64: 128, 128>}, {transform_indices = @transform_1, window_bounds = array<i64: 128, 128>}]} {
    %c0 = arith.constant 0 : index
    %c0_0 = arith.constant 0 : index
    %0 = vector.load %arg1[%c0, %c0_0] : memref<128x128xf32, #tpu.memory_space<vmem>>, vector<128x128xf32>
    %1 = arith.mulf %0, %0 : vector<128x128xf32>
    %cst = arith.constant dense<0.000000e+00> : vector<128xf32>
    %2 = vector.multi_reduction <add>, %1, %cst [0] : vector<128x128xf32> to vector<128xf32>
    %3 = vector.shape_cast %2 : vector<128xf32> to vector<1x128xf32>
    %cst_1 = arith.constant 1.000000e-24 : f32
    %4 = vector.broadcast %cst_1 : f32 to vector<1x128xf32>
    %5 = arith.maximumf %3, %4 : vector<1x128xf32>
    %6 = math.rsqrt %5 : vector<1x128xf32>
    %7 = vector.broadcast %6 : vector<1x128xf32> to vector<128x128xf32>
    %8 = arith.mulf %0, %7 : vector<128x128xf32>
    %9 = arith.truncf %8 : vector<128x128xf32> to vector<128x128xbf16>
    %c0_2 = arith.constant 0 : index
    %c0_3 = arith.constant 0 : index
    %10 = vector.load %arg2[%c0_2, %c0_3] : memref<128x128xbf16, #tpu.memory_space<vmem>>, vector<128x128xbf16>
    tpu.vector_store %arg2[%c0_2, %c0_3], %9 {strides = array<i32>} : memref<128x128xbf16, #tpu.memory_space<vmem>>, vector<128x128xbf16>,
    return
  }
  func.func @transform_0(%arg0: i32) -> (i32, i32) {
    %c0_i32 = arith.constant 0 : i32
    %c0_i32_0 = arith.constant 0 : i32
    return %c0_i32, %arg0 : i32, i32
  }
  func.func @transform_1(%arg0: i32) -> (i32, i32) {
    %c0_i32 = arith.constant 0 : i32
    %c0_i32_0 = arith.constant 0 : i32
    return %c0_i32, %arg0 : i32, i32
  }
}

</mosaic_0001>

<llo_original>
// kernel: tpu_custom_call.1
$region0: #{tpu_custom_call.1}
  #allocation0 [shape = 'u32[]', space=smem, size = 0x4, offset = 0x4, fixed_abs, tag = 'smem constant byte address 0x4 - core index']
  #allocation1 [shape = 'u32[72,128]{1,0:T(1,128)}', space=vmem, size = 0x9000, scoped, tag = 'internal scratch']
  %s0 = inlined_call_operand.hbm [shape: f32[128,128], index: 0, kind: input, shape index: {}]
  %s1 = inlined_call_operand.hbm [shape: bf16[128,128], index: 1, kind: output, shape index: {}]
  %s2 = sld [smem:[#allocation0]]
  $region18: #{tpu_custom_call.1} parent=0
    _
  %s4 = ssub.s32 1, %s2
  %s5 = scalar_select 0, %s4, %s2
  $region1: #{tpu_custom_call.1} parent=0
    #allocation2 [shape = 'u8[65536]{0}', space=vmem, size = 0x10000, scoped, tag = 'input window, operand 0, single buffered']
    #allocation3 [shape = 's32[1]{0}', space=sflag, size = 0x4, scoped, tag = 'scoped memory for tpu_custom_call.1']
    #allocation4 [shape = 's32[1]{0}', space=sflag, size = 0x4, scoped, tag = 'scoped memory for tpu_custom_call.1']
    #allocation5 [shape = 'u8[32768]{0}', space=vmem, size = 0x8000, scoped, tag = 'output window, operand 0, single buffered']
    %6 = vsyncpa [#allocation3], 0
    %7 = vsyncpa [#allocation4], 0
    // Predicated region
    $region2: #{tpu_custom_call.1} parent=1 // pred_check
      _
    $region3: #{tpu_custom_call.1} parent=1 // pred_check_branch
      %9 = sbr.rel (0) target = $region5
    $region4: #{tpu_custom_call.1} parent=1 // pred_region
      %11 = vsyncadd [#allocation3], 0
      %s12 = sshll.u32 %s0, 4
      %s13 = int_to_ptr.hbm [resolvable:$true] %s12
      %s14 = sshll.u32 [#allocation2], 4
      %s15 = int_to_ptr.vmem [resolvable:$true] %s14
      %20 = dma.hbm_to_vmem [thread:$0]  %s13, 2048, %s15, [#allocation3], 128, 128, 8
    $region5: #{tpu_custom_call.1} parent=1 // pred_fallthru
      _
    // Predicated region
    $region6: #{tpu_custom_call.1} parent=1 // pred_check
      _
    $region7: #{tpu_custom_call.1} parent=1 // pred_check_branch
      %22 = sbr.rel (0) target = $region9
    $region8: #{tpu_custom_call.1} parent=1 // pred_region
      %24 = dma.done [#allocation3], 2048
    $region9: #{tpu_custom_call.1} parent=1 // pred_fallthru
      _
    %v25 = vld [vmem:[#allocation2] sm:$0xff]
    %v26 = vld [vmem:[#allocation2 + $0x8] sm:$0xff]
    %v27 = vld [vmem:[#allocation2 + $0x10] sm:$0xff]
    %v28 = vld [vmem:[#allocation2 + $0x18] sm:$0xff]
    %v29 = vld [vmem:[#allocation2 + $0x20] sm:$0xff]
    %v30 = vld [vmem:[#allocation2 + $0x28] sm:$0xff]
    %v31 = vld [vmem:[#allocation2 + $0x30] sm:$0xff]
    %v32 = vld [vmem:[#allocation2 + $0x38] sm:$0xff]
    %v33 = vld [vmem:[#allocation2 + $0x40] sm:$0xff]
    %v34 = vld [vmem:[#allocation2 + $0x48] sm:$0xff]
    %v35 = vld [vmem:[#allocation2 + $0x50] sm:$0xff]
    %v36 = vld [vmem:[#allocation2 + $0x58] sm:$0xff]
    %v37 = vld [vmem:[#allocation2 + $0x60] sm:$0xff]
    %v38 = vld [vmem:[#allocation2 + $0x68] sm:$0xff]
    %v39 = vld [vmem:[#allocation2 + $0x70] sm:$0xff]
    %v40 = vld [vmem:[#allocation2 + $0x78] sm:$0xff]
    %v41 = vmul.f32 %v25, %v25
    %v42 = vmul.f32 %v26, %v26
    %v43 = vmul.f32 %v27, %v27
    %v44 = vmul.f32 %v28, %v28
    %v45 = vmul.f32 %v29, %v29
    %v46 = vmul.f32 %v30, %v30
    %v47 = vmul.f32 %v31, %v31
    %v48 = vmul.f32 %v32, %v32
    %v49 = vmul.f32 %v33, %v33
    %v50 = vmul.f32 %v34, %v34
    %v51 = vmul.f32 %v35, %v35
    %v52 = vmul.f32 %v36, %v36
    %v53 = vmul.f32 %v37, %v37
    %v54 = vmul.f32 %v38, %v38
    %v55 = vmul.f32 %v39, %v39
    %v56 = vmul.f32 %v40, %v40
    %v57 = vadd.f32 %v41, %v42
    %v58 = vadd.f32 %v57, %v43
    %v59 = vadd.f32 %v58, %v44
    %v60 = vadd.f32 %v59, %v45
    %v61 = vadd.f32 %v60, %v46
    %v62 = vadd.f32 %v61, %v47
    %v63 = vadd.f32 %v62, %v48
    %v64 = vadd.f32 %v63, %v49
    %v65 = vadd.f32 %v64, %v50
    %v66 = vadd.f32 %v65, %v51
    %v67 = vadd.f32 %v66, %v52
    %v68 = vadd.f32 %v67, %v53
    %v69 = vadd.f32 %v68, %v54
    %v70 = vadd.f32 %v69, %v55
    %v71 = vadd.f32 %v70, %v56
    %v72 = vrot.slane %v71, 4
    %v73 = vadd.f32 %v71, %v72
    %v74 = vrot.slane %v73, 2
    %v75 = vadd.f32 %v73, %v74
    %v76 = vrot.slane %v75, 1
    %v77 = vadd.f32 %v75, %v76
    %v78 = vmax.f32 %v77, 1e-24
    %v79 = vrsqrt.pop %v78
    %v80 = vmul.f32 %v79, %v78
    %v81 = vmul.f32 %v80, %v79
    %v82 = vmul.f32 0.5, %v81
    %v83 = vsub.f32 1.5, %v82
    %v84 = vmul.f32 %v79, %v83
    %vm85 = vweird.f32 %v78
    %vm86 = vweird.f32 %v79
    %vm87 = vmor %vm85, %vm86
    %v88 = vsel %vm87, %v79, %v84
    %v89 = vmul.f32 %v25, %v88
    %v90 = vmul.f32 %v26, %v88
    %v91 = vmul.f32 %v27, %v88
    %v92 = vmul.f32 %v28, %v88
    %v93 = vmul.f32 %v29, %v88
    %v94 = vmul.f32 %v30, %v88
    %v95 = vmul.f32 %v31, %v88
    %v96 = vmul.f32 %v32, %v88
    %v97 = vmul.f32 %v33, %v88
    %v98 = vmul.f32 %v34, %v88
    %v99 = vmul.f32 %v35, %v88
    %v100 = vmul.f32 %v36, %v88
    %v101 = vmul.f32 %v37, %v88
    %v102 = vmul.f32 %v38, %v88
    %v103 = vmul.f32 %v39, %v88
    %v104 = vmul.f32 %v40, %v88
    %v105 = vpack.c.bf16 %v89, %v89
    %v106 = vpack.c.bf16 %v90, %v90
    %v107 = vpack.c.bf16 %v91, %v91
    %v108 = vpack.c.bf16 %v92, %v92
    %v109 = vpack.c.bf16 %v93, %v93
    %v110 = vpack.c.bf16 %v94, %v94
    %v111 = vpack.c.bf16 %v95, %v95
    %v112 = vpack.c.bf16 %v96, %v96
    %v113 = vpack.c.bf16 %v97, %v97
    %v114 = vpack.c.bf16 %v98, %v98
    %v115 = vpack.c.bf16 %v99, %v99
    %v116 = vpack.c.bf16 %v100, %v100
    %v117 = vpack.c.bf16 %v101, %v101
    %v118 = vpack.c.bf16 %v102, %v102
    %v119 = vpack.c.bf16 %v103, %v103
    %v120 = vpack.c.bf16 %v104, %v104
    %121 = vst [vmem:[#allocation5] sm:$0xf] %v105
    %122 = vst [vmem:[#allocation5 + $0x4] sm:$0xf] %v106
    %123 = vst [vmem:[#allocation5 + $0x8] sm:$0xf] %v107
    %124 = vst [vmem:[#allocation5 + $0xc] sm:$0xf] %v108
    %125 = vst [vmem:[#allocation5 + $0x10] sm:$0xf] %v109
    %126 = vst [vmem:[#allocation5 + $0x14] sm:$0xf] %v110
    %127 = vst [vmem:[#allocation5 + $0x18] sm:$0xf] %v111
    %128 = vst [vmem:[#allocation5 + $0x1c] sm:$0xf] %v112
    %129 = vst [vmem:[#allocation5 + $0x20] sm:$0xf] %v113
    %130 = vst [vmem:[#allocation5 + $0x24] sm:$0xf] %v114
    %131 = vst [vmem:[#allocation5 + $0x28] sm:$0xf] %v115
    %132 = vst [vmem:[#allocation5 + $0x2c] sm:$0xf] %v116
    %133 = vst [vmem:[#allocation5 + $0x30] sm:$0xf] %v117
    %134 = vst [vmem:[#allocation5 + $0x34] sm:$0xf] %v118
    %135 = vst [vmem:[#allocation5 + $0x38] sm:$0xf] %v119
    %136 = vst [vmem:[#allocation5 + $0x3c] sm:$0xf] %v120
    // Predicated region
    $region10: #{tpu_custom_call.1} parent=1 // pred_check
      _
    $region11: #{tpu_custom_call.1} parent=1 // pred_check_branch
      %138 = sbr.rel (0) target = $region13
    $region12: #{tpu_custom_call.1} parent=1 // pred_region
      %140 = vsyncadd [#allocation4], 0
      %s141 = sshll.u32 [#allocation5], 4
      %s142 = int_to_ptr.vmem [resolvable:$true] %s141
      %s143 = sshll.u32 %s1, 4
      %s144 = int_to_ptr.hbm [resolvable:$true] %s143
      %149 = dma.vmem_to_hbm [thread:$0]  %s142, 1024, %s144, [#allocation4], 64, 64, 4
    $region13: #{tpu_custom_call.1} parent=1 // pred_fallthru
      _
    // Predicated region
    $region14: #{tpu_custom_call.1} parent=1 // pred_check
      _
    $region15: #{tpu_custom_call.1} parent=1 // pred_check_branch
      %151 = sbr.rel (0) target = $region17
    $region16: #{tpu_custom_call.1} parent=1 // pred_region
      %153 = dma.done [#allocation4], 1024
    $region17: #{tpu_custom_call.1} parent=1 // pred_fallthru
      _
    %154 = vsyncpa [#allocation3], 1
    %155 = vsyncpa [#allocation4], 1

</llo_original>
